<compile_context>
chip_gen: v7x
topology: tpu7x:2x2x1
jax: 0.10.0
libtpu: 0.0.40
codegen_flags: <defaults>
</compile_context>

<pallas_src>
import functools

import jax
import jax.numpy as jnp
from jax import lax
from jax.experimental import pallas as pl
from jax.experimental.pallas import tpu as pltpu


def _focal_loss_kernel(x_ref, t_ref, *rest, gamma, has_alpha):
    """One (C, TL) tile: fused log-softmax + target gather + focal weighting.

    Classes sit on the sublane axis (axis 0), rows on the lane axis (axis 1).
    Writes a single per-tile partial sum so the row grid can run 'parallel'.
    """
    if has_alpha:
        a_ref, out_ref = rest
    else:
        (out_ref,) = rest

    x = x_ref[...].astype(jnp.float32)            # (C, TL) logits
    t = t_ref[...]                                # (1, TL) int32 targets (-1 = pad)

    # log-sum-exp over the class (sublane) axis
    m = jnp.max(x, axis=0, keepdims=True)                               # (1, TL)
    lse = m + jnp.log(jnp.sum(jnp.exp(x - m), axis=0, keepdims=True))   # (1, TL)

    # Gather the logit at the target class via one-hot select (no dynamic
    # gather on TPU). Avoids materializing the full (C, TL) log-softmax.
    cls = lax.broadcasted_iota(jnp.int32, x.shape, 0)                   # (C, TL)
    x_t = jnp.sum(jnp.where(cls == t, x, 0.0), axis=0, keepdims=True)   # (1, TL)

    logpt = x_t - lse
    pt = jnp.exp(logpt)

    if has_alpha:
        # alpha was gathered per-row in the wrapper: a_ref = alpha[target]
        logpt = logpt * a_ref[...].astype(jnp.float32)

    one_m_pt = 1.0 - pt
    g = float(gamma)
    if g == 0.0:
        focal = jnp.ones_like(pt)
    elif g.is_integer() and 1.0 <= g <= 8.0:
        # integer-power unroll: pure VALU multiplies, avoids pow(0, g) -> NaN
        focal = one_m_pt
        for _ in range(int(g) - 1):
            focal = focal * one_m_pt
    else:
        focal = one_m_pt ** g                     # non-integer gamma fallback

    loss = -focal * logpt                         # (1, TL)
    loss = jnp.where(t >= 0, loss, 0.0)           # padded columns contribute 0

    # per-tile partial sum -> (1, 1, 1) output block
    out_ref[...] = jnp.sum(loss, axis=1, keepdims=True)[None]


def _canonical_alpha(alpha):
    if alpha is None:
        return None
    if isinstance(alpha, (float, int)):
        return jnp.asarray([alpha, 1.0 - alpha], jnp.float32)
    return jnp.asarray(alpha, jnp.float32).reshape(-1)


def focal_loss(x, target, gamma=2.0, alpha=None, size_average=True,
               tile_lanes=None, vmem_tile_bytes=1 << 20):
    """FocalLoss.forward. x: (N, C, *spatial) or (rows, C); target: int class ids."""
    if x.ndim > 2:
        n, c = x.shape[0], x.shape[1]
        # Same row order as input.view(N,C,-1).transpose(1,2).reshape(-1,C),
        # but transposed to (C, rows): a cheap major-axis permute.
        xl = x.reshape(n, c, -1).transpose(1, 0, 2).reshape(c, -1)
    else:
        c = x.shape[1]
        xl = x.T                                   # (C, rows)
    rows = xl.shape[1]
    t = target.reshape(-1).astype(jnp.int32)       # (rows,)

    alpha_vec = _canonical_alpha(alpha)
    has_alpha = alpha_vec is not None
    if has_alpha:
        assert alpha_vec.shape[0] >= c, "alpha must have one weight per class"
        at = alpha_vec[t]                          # gather in the wrapper

    # Row-tile size: rows sit on the lane axis, tile is (C, TL) -> C*TL*itemsize
    # bytes; target ~1 MiB per buffer (well under scoped VMEM even on v5e/v7x
    # with double-buffering), multiple of 128 lanes.
    itemsize = jnp.dtype(x.dtype).itemsize
    if tile_lanes is None:
        tl = max(128, (vmem_tile_bytes // (c * itemsize)) // 128 * 128)
        tl = min(tl, 1 << 15)
    else:
        tl = int(tile_lanes)
    rows_128 = ((rows + 127) // 128) * 128
    tl = min(tl, rows_128)

    rows_p = ((rows + tl - 1) // tl) * tl
    n_tiles = rows_p // tl
    pad = rows_p - rows
    if pad:
        xl = jnp.pad(xl, ((0, 0), (0, pad)))
        t = jnp.pad(t, (0, pad), constant_values=-1)   # -1 marks padded rows
        if has_alpha:
            at = jnp.pad(at, (0, pad))
    t2 = t.reshape(1, rows_p)

    in_specs = [
        pl.BlockSpec((c, tl), lambda i: (0, i)),       # logits tile (classes x rows)
        pl.BlockSpec((1, tl), lambda i: (0, i)),       # target tile
    ]
    args = [xl, t2]
    if has_alpha:
        in_specs.append(pl.BlockSpec((1, tl), lambda i: (0, i)))
        args.append(at.reshape(1, rows_p))

    kernel = functools.partial(_focal_loss_kernel, gamma=float(gamma),
                               has_alpha=has_alpha)

    partials = pl.pallas_call(
        kernel,
        out_shape=jax.ShapeDtypeStruct((n_tiles, 1, 1), jnp.float32),
        grid_spec=pltpu.PrefetchScalarGridSpec(
            num_scalar_prefetch=0,
            grid=(n_tiles,),
            in_specs=in_specs,
            out_specs=pl.BlockSpec((1, 1, 1), lambda i: (i, 0, 0)),
        ),
        compiler_params=pltpu.CompilerParams(
            dimension_semantics=("parallel",)),
    )(*args)

    total = jnp.sum(partials)
    if size_average:
        total = total / jnp.float32(rows)
    return total


def focal_loss_ref(x, target, gamma=2.0, alpha=None, size_average=True):
    """Plain-JAX reference matching the PyTorch module."""
    if x.ndim > 2:
        n, c = x.shape[0], x.shape[1]
        x2 = x.reshape(n, c, -1).transpose(0, 2, 1).reshape(-1, c)
    else:
        x2 = x
    t = target.reshape(-1)
    logp = jax.nn.log_softmax(x2.astype(jnp.float32), axis=-1)
    logpt = jnp.take_along_axis(logp, t[:, None], axis=-1)[:, 0]
    pt = jnp.exp(logpt)
    if alpha is not None:
        a = _canonical_alpha(alpha)
        logpt = logpt * a[t]
    loss = -((1.0 - pt) ** gamma) * logpt
    return loss.mean() if size_average else loss.sum()


if __name__ == "__main__":
    key = jax.random.PRNGKey(0)
    kx, kt = jax.random.split(key)

    N, C, H, W = 2, 4, 16, 16
    x = jax.random.normal(kx, (N, C, H, W), dtype=jnp.float32)
    target = jax.random.randint(kt, (N, H, W), 0, C, dtype=jnp.int32)

    # alpha=None, mean reduction
    out = focal_loss(x, target, gamma=2.0, alpha=None, size_average=True)
    out = jax.block_until_ready(out)
    ref = focal_loss_ref(x, target, gamma=2.0, alpha=None, size_average=True)
    assert jnp.allclose(out, ref, atol=1e-5, rtol=1e-5), (out, ref)

    # per-class alpha, sum reduction (exercises the alpha input path)
    alpha = [0.25, 0.75, 0.5, 0.5]
    out2 = focal_loss(x, target, gamma=2.0, alpha=alpha, size_average=False)
    out2 = jax.block_until_ready(out2)
    ref2 = focal_loss_ref(x, target, gamma=2.0, alpha=alpha, size_average=False)
    assert jnp.allclose(out2, ref2, atol=1e-4, rtol=1e-4), (out2, ref2)

    print("KERNEL_OK")
</pallas_src>

<mosaic_0001>
module attributes {stable_mosaic.version = 11 : i64} {
  func.func @_focal_loss_kernel(%arg0: i32, %arg1: memref<4x512xf32, #tpu.memory_space<vmem>>, %arg2: memref<1x512xi32, #tpu.memory_space<vmem>>, %arg3: memref<1x1x1xf32, #tpu.memory_space<vmem>>) attributes {dimension_semantics = [#tpu.dimension_semantics<parallel>], iteration_bounds = array<i64: 1>, scalar_prefetch = 0 : i64, scratch_operands = 0 : i64, tpu.core_type = #tpu.core_type<tc>, window_params = [{transform_indices = @transform_0, window_bounds = array<i64: 4, 512>}, {transform_indices = @transform_1, window_bounds = array<i64: 1, 512>}, {transform_indices = @transform_2, window_bounds = array<i64: 1, 1, 1>}]} {
    %c0 = arith.constant 0 : index
    %c0_0 = arith.constant 0 : index
    %0 = vector.load %arg1[%c0, %c0_0] : memref<4x512xf32, #tpu.memory_space<vmem>>, vector<4x512xf32>
    %c0_1 = arith.constant 0 : index
    %c0_2 = arith.constant 0 : index
    %1 = vector.load %arg2[%c0_1, %c0_2] : memref<1x512xi32, #tpu.memory_space<vmem>>, vector<1x512xi32>
    %cst = arith.constant dense<0xFF800000> : vector<512xf32>
    %2 = vector.multi_reduction <maximumf>, %0, %cst [0] : vector<4x512xf32> to vector<512xf32>
    %3 = vector.shape_cast %2 : vector<512xf32> to vector<1x512xf32>
    %4 = vector.broadcast %3 : vector<1x512xf32> to vector<4x512xf32>
    %5 = arith.subf %0, %4 : vector<4x512xf32>
    %6 = math.exp %5 : vector<4x512xf32>
    %cst_3 = arith.constant dense<0.000000e+00> : vector<512xf32>
    %7 = vector.multi_reduction <add>, %6, %cst_3 [0] : vector<4x512xf32> to vector<512xf32>
    %8 = vector.shape_cast %7 : vector<512xf32> to vector<1x512xf32>
    %9 = math.log %8 : vector<1x512xf32>
    %10 = arith.addf %3, %9 : vector<1x512xf32>
    %11 = tpu.iota {dimensions = array<i32: 0>} : vector<4x512xi32>
    %12 = vector.broadcast %1 : vector<1x512xi32> to vector<4x512xi32>
    %13 = arith.cmpi eq, %11, %12 : vector<4x512xi32>
    %cst_4 = arith.constant 0.000000e+00 : f32
    %14 = vector.broadcast %cst_4 : f32 to vector<4x512xf32>
    %15 = arith.select %13, %0, %14 : vector<4x512xi1>, vector<4x512xf32>
    %cst_5 = arith.constant dense<0.000000e+00> : vector<512xf32>
    %16 = vector.multi_reduction <add>, %15, %cst_5 [0] : vector<4x512xf32> to vector<512xf32>
    %17 = vector.shape_cast %16 : vector<512xf32> to vector<1x512xf32>
    %18 = arith.subf %17, %10 : vector<1x512xf32>
    %19 = math.exp %18 : vector<1x512xf32>
    %cst_6 = arith.constant 1.000000e+00 : f32
    %20 = vector.broadcast %cst_6 : f32 to vector<1x512xf32>
    %21 = arith.subf %20, %19 : vector<1x512xf32>
    %22 = arith.mulf %21, %21 : vector<1x512xf32>
    %cst_7 = arith.constant 0.000000e+00 : f32
    %23 = vector.broadcast %cst_7 : f32 to vector<1x512xf32>
    %24 = arith.subf %23, %22 : vector<1x512xf32>
    %25 = arith.mulf %24, %18 : vector<1x512xf32>
    %c0_i32 = arith.constant 0 : i32
    %26 = vector.broadcast %c0_i32 : i32 to vector<1x512xi32>
    %27 = arith.cmpi sge, %1, %26 : vector<1x512xi32>
    %cst_8 = arith.constant 0.000000e+00 : f32
    %28 = vector.broadcast %cst_8 : f32 to vector<1x512xf32>
    %29 = arith.select %27, %25, %28 : vector<1x512xi1>, vector<1x512xf32>
    %cst_9 = arith.constant dense<0.000000e+00> : vector<1xf32>
    %30 = vector.multi_reduction <add>, %29, %cst_9 [1] : vector<1x512xf32> to vector<1xf32>
    %31 = vector.shape_cast %30 : vector<1xf32> to vector<1x1xf32>
    %32 = vector.shape_cast %31 : vector<1x1xf32> to vector<1x1x1xf32>
    %c0_10 = arith.constant 0 : index
    %c0_11 = arith.constant 0 : index
    %c0_12 = arith.constant 0 : index
    %33 = vector.load %arg3[%c0_10, %c0_11, %c0_12] : memref<1x1x1xf32, #tpu.memory_space<vmem>>, vector<1x1x1xf32>
    tpu.vector_store %arg3[%c0_10, %c0_11, %c0_12], %32 {strides = array<i32>} : memref<1x1x1xf32, #tpu.memory_space<vmem>>, vector<1x1x1xf32>,
    return
  }
  func.func @transform_0(%arg0: i32) -> (i32, i32) {
    %c0_i32 = arith.constant 0 : i32
    %c0_i32_0 = arith.constant 0 : i32
    return %c0_i32, %arg0 : i32, i32
  }
  func.func @transform_1(%arg0: i32) -> (i32, i32) {
    %c0_i32 = arith.constant 0 : i32
    %c0_i32_0 = arith.constant 0 : i32
    return %c0_i32, %arg0 : i32, i32
  }
  func.func @transform_2(%arg0: i32) -> (i32, i32, i32) {
    %c0_i32 = arith.constant 0 : i32
    %c0_i32_0 = arith.constant 0 : i32
    %c0_i32_1 = arith.constant 0 : i32
    return %arg0, %c0_i32, %c0_i32_0 : i32, i32, i32
  }
}

</mosaic_0001>

<llo_original>
// kernel: tpu_custom_call.1
$region0: #{tpu_custom_call.1}
  #allocation0 [shape = 'u32[]', space=smem, size = 0x4, offset = 0x4, fixed_abs, tag = 'smem constant byte address 0x4 - core index']
  #allocation1 [shape = 'u32[144,128]{1,0:T(1,128)}', space=vmem, size = 0x12000, scoped, tag = 'internal scratch']
  %s0 = inlined_call_operand.hbm [shape: f32[4,512], index: 0, kind: input, shape index: {}]
  %s1 = inlined_call_operand.hbm [shape: s32[1,512], index: 1, kind: input, shape index: {}]
  %s2 = inlined_call_operand.hbm [shape: f32[1,1,1], index: 2, kind: output, shape index: {}]
  %s3 = sld [smem:[#allocation0]]
  $region26: #{tpu_custom_call.1} parent=0
    _
  %s5 = ssub.s32 1, %s3
  %s6 = scalar_select 0, %s5, %s3
  $region1: #{tpu_custom_call.1} parent=0
    #allocation2 [shape = 'u8[8192]{0}', space=vmem, size = 0x2000, scoped, tag = 'input window, operand 0, single buffered']
    #allocation3 [shape = 's32[1]{0}', space=sflag, size = 0x4, scoped, tag = 'scoped memory for tpu_custom_call.1']
    #allocation4 [shape = 's32[1]{0}', space=sflag, size = 0x4, scoped, tag = 'scoped memory for tpu_custom_call.1']
    #allocation5 [shape = 'u8[2048]{0}', space=vmem, size = 0x800, scoped, tag = 'input window, operand 1, single buffered']
    #allocation6 [shape = 's32[1]{0}', space=sflag, size = 0x4, scoped, tag = 'scoped memory for tpu_custom_call.1']
    #allocation7 [shape = 'u8[512]{0}', space=vmem, size = 0x400, scoped, tag = 'output window, operand 0, single buffered']
    %7 = vsyncpa [#allocation3], 0
    %8 = vsyncpa [#allocation6], 0
    %9 = vsyncpa [#allocation4], 0
    // Predicated region
    $region2: #{tpu_custom_call.1} parent=1 // pred_check
      _
    $region3: #{tpu_custom_call.1} parent=1 // pred_check_branch
      %11 = sbr.rel (0) target = $region5
    $region4: #{tpu_custom_call.1} parent=1 // pred_region
      %s13 = ssub.s32 256, 256
      %14 = vsyncadd [#allocation3], %s13
      %s16 = sshll.u32 [#allocation2], 4
      %s17 = int_to_ptr.vmem [resolvable:$true] %s16
      %19 = dma.hbm_to_vmem [thread:$0]  %s0, 256, %s17, [#allocation3]
    $region5: #{tpu_custom_call.1} parent=1 // pred_fallthru
      _
    // Predicated region
    $region6: #{tpu_custom_call.1} parent=1 // pred_check
      _
    $region7: #{tpu_custom_call.1} parent=1 // pred_check_branch
      %21 = sbr.rel (0) target = $region9
    $region8: #{tpu_custom_call.1} parent=1 // pred_region
      %s23 = ssub.s32 64, 64
      %24 = vsyncadd [#allocation6], %s23
      %s26 = sshll.u32 [#allocation5], 4
      %s27 = int_to_ptr.vmem [resolvable:$true] %s26
      %29 = dma.hbm_to_vmem [thread:$0]  %s1, 64, %s27, [#allocation6]
    $region9: #{tpu_custom_call.1} parent=1 // pred_fallthru
      _
    // Predicated region
    $region10: #{tpu_custom_call.1} parent=1 // pred_check
      _
    $region11: #{tpu_custom_call.1} parent=1 // pred_check_branch
      %31 = sbr.rel (0) target = $region13
    $region12: #{tpu_custom_call.1} parent=1 // pred_region
      %32 = dma.done [#allocation3], 256
    $region13: #{tpu_custom_call.1} parent=1 // pred_fallthru
      _
    // Predicated region
    $region14: #{tpu_custom_call.1} parent=1 // pred_check
      _
    $region15: #{tpu_custom_call.1} parent=1 // pred_check_branch
      %34 = sbr.rel (0) target = $region17
    $region16: #{tpu_custom_call.1} parent=1 // pred_region
      %35 = dma.done [#allocation6], 64
    $region17: #{tpu_custom_call.1} parent=1 // pred_fallthru
      _
    %v36 = vld [vmem:[#allocation2] sm:$0xff]
    %v37 = vld [vmem:[#allocation2 + $0x8] sm:$0xff]
    %v38 = vld [vmem:[#allocation5] sm:$0xf]
    %v41 = vcombine.high %v36, %v36
    %v42 = vcombine.high %v37, %v37
    %vm45 = vcmask 1043456
    %v46 = vsel %vm45, %v36, -inf
    %v47 = vrot.slane %v46, 4
    %v48 = vmax.f32 %v46, %v47
    %v49 = vrot.slane %v48, 2
    %v50 = vmax.f32 %v48, %v49
    %v51 = vrot.slane %v50, 1
    %v52 = vmax.f32 %v50, %v51
    %v53 = vsel %vm45, %v41, -inf
    %v54 = vrot.slane %v53, 4
    %v55 = vmax.f32 %v53, %v54
    %v56 = vrot.slane %v55, 2
    %v57 = vmax.f32 %v55, %v56
    %v58 = vrot.slane %v57, 1
    %v59 = vmax.f32 %v57, %v58
    %v60 = vsel %vm45, %v37, -inf
    %v61 = vrot.slane %v60, 4
    %v62 = vmax.f32 %v60, %v61
    %v63 = vrot.slane %v62, 2
    %v64 = vmax.f32 %v62, %v63
    %v65 = vrot.slane %v64, 1
    %v66 = vmax.f32 %v64, %v65
    %v67 = vsel %vm45, %v42, -inf
    %v68 = vrot.slane %v67, 4
    %v69 = vmax.f32 %v67, %v68
    %v70 = vrot.slane %v69, 2
    %v71 = vmax.f32 %v69, %v70
    %v72 = vrot.slane %v71, 1
    %v73 = vmax.f32 %v71, %v72
    %v78 = vcombine.low %v52, %v59
    %v79 = vcombine.low %v66, %v73
    %v82 = vsub.f32 %v36, %v78
    %v83 = vsub.f32 %v37, %v79
    %v84 = vmul.f32 %v82, 1.442695
    %v85 = vpow.pop %v84
    %v86 = vmul.f32 %v83, 1.442695
    %v87 = vpow.pop %v86
    %v90 = vcombine.high %v85, %v85
    %v91 = vcombine.high %v87, %v87
    %v94 = vsel %vm45, %v85, 0.0
    %v95 = vrot.slane %v94, 4
    %v96 = vadd.f32 %v94, %v95
    %v97 = vrot.slane %v96, 2
    %v98 = vadd.f32 %v96, %v97
    %v99 = vrot.slane %v98, 1
    %v100 = vadd.f32 %v98, %v99
    %v101 = vsel %vm45, %v90, 0.0
    %v102 = vrot.slane %v101, 4
    %v103 = vadd.f32 %v101, %v102
    %v104 = vrot.slane %v103, 2
    %v105 = vadd.f32 %v103, %v104
    %v106 = vrot.slane %v105, 1
    %v107 = vadd.f32 %v105, %v106
    %v108 = vsel %vm45, %v87, 0.0
    %v109 = vrot.slane %v108, 4
    %v110 = vadd.f32 %v108, %v109
    %v111 = vrot.slane %v110, 2
    %v112 = vadd.f32 %v110, %v111
    %v113 = vrot.slane %v112, 1
    %v114 = vadd.f32 %v112, %v113
    %v115 = vsel %vm45, %v91, 0.0
    %v116 = vrot.slane %v115, 4
    %v117 = vadd.f32 %v115, %v116
    %v118 = vrot.slane %v117, 2
    %v119 = vadd.f32 %v117, %v118
    %v120 = vrot.slane %v119, 1
    %v121 = vadd.f32 %v119, %v120
    %v122 = vlog2.pop %v100
    %v123 = vmul.f32 %v122, 0.6931472
    %v124 = vlog2.pop %v107
    %v125 = vmul.f32 %v124, 0.6931472
    %v126 = vlog2.pop %v114
    %v127 = vmul.f32 %v126, 0.6931472
    %v128 = vlog2.pop %v121
    %v129 = vmul.f32 %v128, 0.6931472
    %v130 = vadd.f32 %v52, %v123
    %v131 = vadd.f32 %v59, %v125
    %v132 = vadd.f32 %v66, %v127
    %v133 = vadd.f32 %v73, %v129
    %v134 = vlaneseq
    %v135 = vshrl.u32 %v134, 7
    %v136 = vlaneseq
    %v137 = vshrl.u32 %v136, 7
    %v138 = vsub.s32 0, %v137
    %v139 = vrot.slane %v38, %v138
    %v140 = vlaneseq
    %v141 = vshrl.u32 %v140, 7
    %v142 = vsub.s32 1, %v141
    %v143 = vrot.slane %v38, %v142
    %v144 = vlaneseq
    %v145 = vshrl.u32 %v144, 7
    %v146 = vsub.s32 2, %v145
    %v147 = vrot.slane %v38, %v146
    %v148 = vlaneseq
    %v149 = vshrl.u32 %v148, 7
    %v150 = vsub.s32 3, %v149
    %v151 = vrot.slane %v38, %v150
    %vm152 = vcmp.eq.s32.totalorder %v135, %v139
    %vm153 = vcmp.eq.s32.totalorder %v135, %v143
    %vm154 = vcmp.eq.s32.totalorder %v135, %v147
    %vm155 = vcmp.eq.s32.totalorder %v135, %v151
    %v156 = vsel %vm152, %v36, 0.0
    %v157 = vsel %vm153, %v41, 0.0
    %v158 = vsel %vm154, %v37, 0.0
    %v159 = vsel %vm155, %v42, 0.0
    %v160 = vsel %vm45, %v156, 0.0
    %v161 = vrot.slane %v160, 4
    %v162 = vadd.f32 %v160, %v161
    %v163 = vrot.slane %v162, 2
    %v164 = vadd.f32 %v162, %v163
    %v165 = vrot.slane %v164, 1
    %v166 = vadd.f32 %v164, %v165
    %v167 = vsel %vm45, %v157, 0.0
    %v168 = vrot.slane %v167, 4
    %v169 = vadd.f32 %v167, %v168
    %v170 = vrot.slane %v169, 2
    %v171 = vadd.f32 %v169, %v170
    %v172 = vrot.slane %v171, 1
    %v173 = vadd.f32 %v171, %v172
    %v174 = vsel %vm45, %v158, 0.0
    %v175 = vrot.slane %v174, 4
    %v176 = vadd.f32 %v174, %v175
    %v177 = vrot.slane %v176, 2
    %v178 = vadd.f32 %v176, %v177
    %v179 = vrot.slane %v178, 1
    %v180 = vadd.f32 %v178, %v179
    %v181 = vsel %vm45, %v159, 0.0
    %v182 = vrot.slane %v181, 4
    %v183 = vadd.f32 %v181, %v182
    %v184 = vrot.slane %v183, 2
    %v185 = vadd.f32 %v183, %v184
    %v186 = vrot.slane %v185, 1
    %v187 = vadd.f32 %v185, %v186
    %v188 = vsub.f32 %v166, %v130
    %v189 = vsub.f32 %v173, %v131
    %v190 = vsub.f32 %v180, %v132
    %v191 = vsub.f32 %v187, %v133
    %v192 = vmul.f32 %v188, 1.442695
    %v193 = vpow.pop %v192
    %v194 = vmul.f32 %v189, 1.442695
    %v195 = vpow.pop %v194
    %v196 = vmul.f32 %v190, 1.442695
    %v197 = vpow.pop %v196
    %v198 = vmul.f32 %v191, 1.442695
    %v199 = vpow.pop %v198
    %v200 = vsub.f32 1.0, %v193
    %v201 = vsub.f32 1.0, %v195
    %v202 = vsub.f32 1.0, %v197
    %v203 = vsub.f32 1.0, %v199
    %v204 = vmul.f32 %v200, %v200
    %v205 = vmul.f32 %v201, %v201
    %v206 = vmul.f32 %v202, %v202
    %v207 = vmul.f32 %v203, %v203
    %v208 = vsub.f32 0.0, %v204
    %v209 = vsub.f32 0.0, %v205
    %v210 = vsub.f32 0.0, %v206
    %v211 = vsub.f32 0.0, %v207
    %v212 = vmul.f32 %v208, %v188
    %v213 = vmul.f32 %v209, %v189
    %v214 = vmul.f32 %v210, %v190
    %v215 = vmul.f32 %v211, %v191
    %vm216 = vcmp.ge.s32.totalorder %v38, 0
    %v221 = vcombine.low %v212, %v213
    %v222 = vcombine.low %v214, %v215
    %v224 = vunpack.c.l.s4 1966171168
    %v225 = vunpack.c.0.s8 %v224
    %v226 = vlaneseq
    %v227 = vshrl.u32 %v226, 7
    %v228 = vsub.s32 %v225, %v227
    %v229 = vrot.slane %v221, %v228
    %v231 = vunpack.c.l.s4 1966171168
    %v232 = vunpack.c.0.s8 %v231
    %v233 = vlaneseq
    %v234 = vshrl.u32 %v233, 7
    %v235 = vsub.s32 %v232, %v234
    %v236 = vrot.slane %v222, %v235
    %v237 = vcombine.low %v229, %v236
    %v239 = vunpack.c.l.s4 1966171168
    %v240 = vunpack.c.0.s8 %v239
    %v241 = vlaneseq
    %v242 = vshrl.u32 %v241, 7
    %v243 = vsub.s32 %v240, %v242
    %v244 = vrot.slane %v237, %v243
    %v246 = vsel %vm216, %v244, 0.0
    %v248 = vlaneseq
    %v249 = vshrl.u32 %v248, 7
    %v250 = vsub.s32 0, %v249
    %v251 = vrot.slane %v246, %v250
    %v252 = vlaneseq
    %v253 = vshrl.u32 %v252, 7
    %v254 = vsub.s32 1, %v253
    %v255 = vrot.slane %v246, %v254
    %v256 = vlaneseq
    %v257 = vshrl.u32 %v256, 7
    %v258 = vsub.s32 2, %v257
    %v259 = vrot.slane %v246, %v258
    %v260 = vlaneseq
    %v261 = vshrl.u32 %v260, 7
    %v262 = vsub.s32 3, %v261
    %v263 = vrot.slane %v246, %v262
    %vm268 = vcmask 1040384
    %v269 = vsel %vm268, %v251, 0.0
    %v270 = vsel %vm268, %v255, 0.0
    %v271 = vadd.f32 %v269, %v270
    %v272 = vsel %vm268, %v259, 0.0
    %v273 = vadd.f32 %v271, %v272
    %v274 = vsel %vm268, %v263, 0.0
    %v275 = vadd.f32 %v273, %v274
    %276 = vadd.xlane.f32.xlu0 %v275
    %v277 = vpop.xlane.xlu0 %276
    %vm278 = vcmask 0
    %279 = vst.msk [vmem:[#allocation7] sm:$0x1] %vm278, %v277
    // Predicated region
    $region18: #{tpu_custom_call.1} parent=1 // pred_check
      _
    $region19: #{tpu_custom_call.1} parent=1 // pred_check_branch
      %281 = sbr.rel (0) target = $region21
    $region20: #{tpu_custom_call.1} parent=1 // pred_region
      %s283 = ssub.s32 16, 16
      %284 = vsyncadd [#allocation4], %s283
      %s286 = sshll.u32 [#allocation7], 4
      %s287 = int_to_ptr.vmem [resolvable:$true] %s286
      %289 = dma.vmem_to_hbm [thread:$0]  %s287, 16, %s2, [#allocation4]
    $region21: #{tpu_custom_call.1} parent=1 // pred_fallthru
      _
    // Predicated region
    $region22: #{tpu_custom_call.1} parent=1 // pred_check
      _
    $region23: #{tpu_custom_call.1} parent=1 // pred_check_branch
      %291 = sbr.rel (0) target = $region25
    $region24: #{tpu_custom_call.1} parent=1 // pred_region
      %292 = dma.done [#allocation4], 16
    $region25: #{tpu_custom_call.1} parent=1 // pred_fallthru
      _
    %293 = vsyncpa [#allocation3], 1
    %294 = vsyncpa [#allocation6], 1
    %295 = vsyncpa [#allocation4], 1

</llo_original>
